<compile_context>
chip_gen: v7x
topology: tpu7x:2x2x1
jax: 0.10.0
libtpu: 0.0.40
codegen_flags: <defaults>
</compile_context>

<pallas_src>
import jax
import jax.numpy as jnp
from jax.experimental import pallas as pl
from jax.experimental.pallas import tpu as pltpu

ALPHA = 0.2          # LeakyReLU negative slope
BN_EPS = 1e-5        # nn.BatchNorm1d default eps
CLIP_MIN = 1e-6

D_IN = 16
D_H0, D_H1 = 32, 32
D_OUT = 8

MIN_GRID = 4         # keep >= 2 steps per TensorCore on dual-TC v7x when batch allows

# ---- parameter-slab layout (all offsets 8-sublane aligned) -------------------------
# Row-oriented slab (88, 32): weights as (out, in) rows + first-BN row vectors.
_W0_R, _W1_R, _W2_R, _S0_R, _T0_R = 0, 32, 64, 72, 80
_ROW_SLAB_SHAPE = (88, 32)
# Column-oriented slab (200, 1): per-feature column vectors broadcast along lanes.
_B0_C, _S1_C, _T1_C, _B1_C, _S2_C, _T2_C, _B2_C = 0, 32, 64, 96, 128, 160, 192
_COL_SLAB_SHAPE = (200, 1)

# dot_general dimension numbers for A(m,k) . B(n,k)^T  (the q@k.T form)
_TRANS_B = (((1,), (1,)), ((), ()))


def _leaky(x, alpha=ALPHA):
    return jnp.where(x > 0, x, alpha * x)


def mlp_kernel(x_ref, row_ref, col_ref, o_ref):
    """One batch tile of the full MLP forward, computed feature-major (batch on lanes)."""
    x = x_ref[...].astype(jnp.float32)                       # (bm, d_in)  batch-major

    # Block 0: BatchNorm1d(d_in) -> leaky_relu (batch-major, tiny elementwise work),
    # then Linear(d_in, h0) via trans-B dot, which flips the layout to feature-major.
    s0 = row_ref[_S0_R:_S0_R + 1, 0:D_IN]                    # (1, d_in)
    t0 = row_ref[_T0_R:_T0_R + 1, 0:D_IN]
    a = _leaky(x * s0 + t0)                                  # (bm, d_in)

    w0 = row_ref[_W0_R:_W0_R + D_H0, 0:D_IN]                 # (h0, d_in)
    b0 = col_ref[_B0_C:_B0_C + D_H0, :]                      # (h0, 1)
    h = jax.lax.dot_general(w0, a, _TRANS_B,
                            preferred_element_type=jnp.float32)   # (h0, bm)
    h = _leaky(h + b0)

    # Block 1: BatchNorm1d(h0) -> leaky_relu -> Linear(h0, h1) -> leaky_relu
    s1 = col_ref[_S1_C:_S1_C + D_H0, :]
    t1 = col_ref[_T1_C:_T1_C + D_H0, :]
    h = _leaky(h * s1 + t1)                                  # (h0, bm)
    w1 = row_ref[_W1_R:_W1_R + D_H1, 0:D_H0]                 # (h1, h0)
    b1 = col_ref[_B1_C:_B1_C + D_H1, :]
    h = _leaky(jnp.dot(w1, h, preferred_element_type=jnp.float32) + b1)   # (h1, bm)

    # Final: BatchNorm1d(h1) -> leaky_relu -> Linear(h1, d_out)  (no activation)
    s2 = col_ref[_S2_C:_S2_C + D_H1, :]
    t2 = col_ref[_T2_C:_T2_C + D_H1, :]
    h = _leaky(h * s2 + t2)                                  # (h1, bm)
    w2 = row_ref[_W2_R:_W2_R + D_OUT, 0:D_H1]                # (d_out, h1)
    b2 = col_ref[_B2_C:_B2_C + D_OUT, :]                     # (d_out, 1)
    logits = jnp.dot(w2, h, preferred_element_type=jnp.float32) + b2      # (d_out, bm)

    # clip(min=1e-6) then log_softmax over the class axis (axis 0 in feature-major).
    logits = jnp.maximum(logits, CLIP_MIN)
    m = jnp.max(logits, axis=0, keepdims=True)               # (1, bm) sublane reduce
    z = logits - m
    lse = jnp.log(jnp.sum(jnp.exp(z), axis=0, keepdims=True))
    o_ref[...] = (z - lse).astype(o_ref.dtype)               # (d_out, bm), lane-dense store


def init_params(key):
    """Deterministic synthetic parameters matching the module's shapes / init scheme."""
    def xavier_normal(k, out_f, in_f, gain=1.414):
        std = gain * (2.0 / (in_f + out_f)) ** 0.5
        return std * jax.random.normal(k, (out_f, in_f), jnp.float32)

    def linear_bias(k, in_f, out_f):
        bound = 1.0 / (in_f ** 0.5)
        return jax.random.uniform(k, (out_f,), jnp.float32, -bound, bound)

    def bn_fold(k, feat):
        k1, k2, k3, k4 = jax.random.split(k, 4)
        gamma = 1.0 + 0.1 * jax.random.normal(k1, (feat,), jnp.float32)
        beta = 0.1 * jax.random.normal(k2, (feat,), jnp.float32)
        run_mean = 0.1 * jax.random.normal(k3, (feat,), jnp.float32)
        run_var = 1.0 + 0.1 * jax.random.uniform(k4, (feat,), jnp.float32)
        # Fold eval-mode BN into per-feature scale / shift.
        scale = gamma / jnp.sqrt(run_var + BN_EPS)
        shift = beta - run_mean * scale
        return scale, shift

    dims = [D_IN, D_H0, D_H1, D_OUT]
    keys = jax.random.split(key, 3 * (len(dims) - 1))
    params = []
    for i in range(len(dims) - 1):
        d_prev, d_next = dims[i], dims[i + 1]
        kb, kw, kbias = keys[3 * i], keys[3 * i + 1], keys[3 * i + 2]
        scale, shift = bn_fold(kb, d_prev)                    # (d_prev,), (d_prev,)
        w = xavier_normal(kw, d_next, d_prev)                 # (out, in) like nn.Linear.weight
        b = linear_bias(kbias, d_prev, d_next)                # (out,)
        params.append((scale, shift, w, b))
    return params


def _pack_params(params):
    """Consolidate the 12 tiny parameters into 2 slabs (fewer operands / grid-start DMAs).

    Tiny (~2 KB) work; hoist out of the hot path if params are static across calls.
    """
    (s0, t0, w0, b0), (s1, t1, w1, b1), (s2, t2, w2, b2) = params

    row = jnp.zeros(_ROW_SLAB_SHAPE, jnp.float32)
    row = row.at[_W0_R:_W0_R + D_H0, 0:D_IN].set(w0)
    row = row.at[_W1_R:_W1_R + D_H1, 0:D_H0].set(w1)
    row = row.at[_W2_R:_W2_R + D_OUT, 0:D_H1].set(w2)
    row = row.at[_S0_R, 0:D_IN].set(s0)
    row = row.at[_T0_R, 0:D_IN].set(t0)

    col = jnp.zeros(_COL_SLAB_SHAPE, jnp.float32)
    col = col.at[_B0_C:_B0_C + D_H0, 0].set(b0)
    col = col.at[_S1_C:_S1_C + D_H0, 0].set(s1)
    col = col.at[_T1_C:_T1_C + D_H0, 0].set(t1)
    col = col.at[_B1_C:_B1_C + D_H1, 0].set(b1)
    col = col.at[_S2_C:_S2_C + D_H1, 0].set(s2)
    col = col.at[_T2_C:_T2_C + D_H1, 0].set(t2)
    col = col.at[_B2_C:_B2_C + D_OUT, 0].set(b2)
    return row, col


def _round_up(v, m):
    return ((v + m - 1) // m) * m


def mlp_forward(x, params, *, bm=8192, class_major=False):
    """Forward pass.

    class_major=False (default): returns (n, d_out) log-probabilities, drop-in parity
    with the PyTorch module (costs one extra HBM pass for the final transpose).
    class_major=True: returns the kernel's native lane-dense (d_out, n) output with no
    extra passes — preferred when the consumer can take class-major data.

    bm: batch-tile size (multiple of 128).  8192 amortizes the ~0.35 us/step overhead
    on all generations; v5e is already at roofline by ~4096.
    """
    # Mirror x.view(-1, d_in).  No dtype cast here: bf16 inputs are DMA'd as-is and
    # upcast inside the kernel.
    x2d = x.reshape(-1, D_IN)
    n = x2d.shape[0]

    # Batch tile = lane axis of the feature-major intermediates -> multiple of 128.
    # Cap it so (a) it never exceeds the batch and (b) the grid keeps >= MIN_GRID steps
    # when the batch allows (feeds both v7x TensorCores via the "parallel" axis).
    bm_req = max(128, _round_up(min(bm, n), 128))
    bm_split = max(128, _round_up(pl.cdiv(n, MIN_GRID), 128))
    bm_eff = min(bm_req, bm_split)
    grid = pl.cdiv(n, bm_eff)          # ragged last block; no jnp.pad of the input

    row_slab, col_slab = _pack_params(params)

    matmul_flops = 2 * (D_IN * D_H0 + D_H0 * D_H1 + D_H1 * D_OUT)   # per row
    cost = pl.CostEstimate(
        flops=int(n * (matmul_flops + 640)),                        # + elementwise
        transcendentals=int(n * (D_OUT + 1)),                       # exp per class + log
        bytes_accessed=int(n * (D_IN * x2d.dtype.itemsize + D_OUT * 4)
                           + row_slab.size * 4 + col_slab.size * 4),
    )

    out_fm = pl.pallas_call(
        mlp_kernel,
        out_shape=jax.ShapeDtypeStruct((D_OUT, n), jnp.float32),
        grid_spec=pltpu.PrefetchScalarGridSpec(
            num_scalar_prefetch=0,
            grid=(grid,),
            in_specs=[
                pl.BlockSpec((bm_eff, D_IN), lambda i: (i, 0)),
                # Parameter slabs: full-array blocks, constant index_map -> VMEM-resident,
                # DMA'd once at grid start, never re-fetched.
                pl.BlockSpec(_ROW_SLAB_SHAPE, lambda i: (0, 0)),
                pl.BlockSpec(_COL_SLAB_SHAPE, lambda i: (0, 0)),
            ],
            out_specs=pl.BlockSpec((D_OUT, bm_eff), lambda i: (0, i)),
        ),
        compiler_params=pltpu.CompilerParams(
            dimension_semantics=("parallel",),
            vmem_limit_bytes=32 * 1024 * 1024,   # safe on v5e/v6e (128 MiB) and v7x (64 MiB)
        ),
        cost_estimate=cost,
    )(x2d, row_slab, col_slab)

    if class_major:
        return out_fm                  # (d_out, n), no extra HBM pass
    return out_fm.T                    # (n, d_out), drop-in parity with the module


def mlp_reference(x, params):
    """Pure-JAX reference for correctness checking (batch-major)."""
    h = x.reshape(-1, D_IN).astype(jnp.float32)
    n_layers = len(params)
    for i, (scale, shift, w, b) in enumerate(params):
        h = _leaky(h * scale[None, :] + shift[None, :])        # BN (eval) + leaky_relu
        h = h @ w.T + b[None, :]                               # Linear
        if i < n_layers - 1:
            h = _leaky(h)                                      # leaky_relu on all but last
    h = jnp.maximum(h, CLIP_MIN)
    return jax.nn.log_softmax(h, axis=1)


if __name__ == "__main__":
    key = jax.random.PRNGKey(0)
    k_param, k_x1, k_x2, k_x3 = jax.random.split(key, 4)

    params = init_params(k_param)

    # 1) Tiny batch consistent with the module (batch=8, d_in=16): single ragged tile
    #    (8 valid rows of a 128-row block / 8 valid lanes of a 128-lane output block).
    x_small = jax.random.normal(k_x1, (8, D_IN), jnp.float32)
    out_small = jax.block_until_ready(mlp_forward(x_small, params))
    ref_small = mlp_reference(x_small, params)
    assert out_small.shape == (8, D_OUT)
    assert jnp.allclose(out_small, ref_small, atol=1e-5, rtol=1e-5), "mismatch (small)"

    # 2) Multi-tile grid with a ragged last block and no input padding:
    #    600 rows, 256-row tiles -> grid of 3 (last block = 88 valid rows).
    x_mid = jax.random.normal(k_x2, (600, D_IN), jnp.float32)
    out_mid = jax.block_until_ready(mlp_forward(x_mid, params, bm=256))
    ref_mid = mlp_reference(x_mid, params)
    assert out_mid.shape == (600, D_OUT)
    assert jnp.allclose(out_mid, ref_mid, atol=1e-5, rtol=1e-5), "mismatch (ragged grid)"

    # 3) n not a multiple of 8/128, default bm (auto-split to keep grid >= 4),
    #    class-major fast path (no wrapper transpose).
    x_odd = jax.random.normal(k_x3, (1003, D_IN), jnp.float32)
    out_cm = jax.block_until_ready(mlp_forward(x_odd, params, class_major=True))
    ref_odd = mlp_reference(x_odd, params)
    assert out_cm.shape == (D_OUT, 1003)
    assert jnp.allclose(out_cm, ref_odd.T, atol=1e-5, rtol=1e-5), "mismatch (class-major)"

    print("KERNEL_OK")
</pallas_src>

<mosaic_0001>
module attributes {stable_mosaic.version = 11 : i64} {
  func.func @mlp_kernel(%arg0: i32, %arg1: memref<128x16xf32, #tpu.memory_space<vmem>>, %arg2: memref<88x32xf32, #tpu.memory_space<vmem>>, %arg3: memref<200x1xf32, #tpu.memory_space<vmem>>, %arg4: memref<8x128xf32, #tpu.memory_space<vmem>>) attributes {dimension_semantics = [#tpu.dimension_semantics<parallel>], iteration_bounds = array<i64: 1>, scalar_prefetch = 0 : i64, scratch_operands = 0 : i64, tpu.core_type = #tpu.core_type<tc>, window_params = [{transform_indices = @transform_0, window_bounds = array<i64: 128, 16>}, {pipeline_mode = #tpu.pipeline_mode<synchronous>, transform_indices = @transform_1, window_bounds = array<i64: 88, 32>}, {pipeline_mode = #tpu.pipeline_mode<synchronous>, transform_indices = @transform_2, window_bounds = array<i64: 200, 1>}, {transform_indices = @transform_3, window_bounds = array<i64: 8, 128>}]} {
    %c0 = arith.constant 0 : index
    %c0_0 = arith.constant 0 : index
    %0 = vector.load %arg1[%c0, %c0_0] : memref<128x16xf32, #tpu.memory_space<vmem>>, vector<128x16xf32>
    %c72 = arith.constant 72 : index
    %c0_1 = arith.constant 0 : index
    %1 = vector.load %arg2[%c72, %c0_1] : memref<88x32xf32, #tpu.memory_space<vmem>>, vector<1x16xf32>
    %c80 = arith.constant 80 : index
    %c0_2 = arith.constant 0 : index
    %2 = vector.load %arg2[%c80, %c0_2] : memref<88x32xf32, #tpu.memory_space<vmem>>, vector<1x16xf32>
    %3 = vector.broadcast %1 : vector<1x16xf32> to vector<128x16xf32>
    %4 = arith.mulf %0, %3 : vector<128x16xf32>
    %5 = vector.broadcast %2 : vector<1x16xf32> to vector<128x16xf32>
    %6 = arith.addf %4, %5 : vector<128x16xf32>
    %cst = arith.constant 0.000000e+00 : f32
    %7 = vector.broadcast %cst : f32 to vector<128x16xf32>
    %8 = arith.cmpf ogt, %6, %7 : vector<128x16xf32>
    %cst_3 = arith.constant 2.000000e-01 : f32
    %9 = vector.broadcast %cst_3 : f32 to vector<128x16xf32>
    %10 = arith.mulf %9, %6 : vector<128x16xf32>
    %11 = arith.select %8, %6, %10 : vector<128x16xi1>, vector<128x16xf32>
    %c0_4 = arith.constant 0 : index
    %c0_5 = arith.constant 0 : index
    %12 = vector.load %arg2[%c0_4, %c0_5] : memref<88x32xf32, #tpu.memory_space<vmem>>, vector<32x16xf32>
    %c0_6 = arith.constant 0 : index
    %c0_7 = arith.constant 0 : index
    %13 = vector.load %arg3[%c0_6, %c0_7] : memref<200x1xf32, #tpu.memory_space<vmem>>, vector<32x1xf32>
    %cst_8 = arith.constant dense<0.000000e+00> : vector<32x128xf32>
    %14 = tpu.matmul %12, %11, %cst_8 {dimension_numbers = #tpu.dot_dimension_numbers<[1], [1], [0], [0], [0, 0, 1, 0], [], []>} : vector<32x16xf32>, vector<128x16xf32>, vector<32x128xf32> -> vector<32x128xf32>
    %15 = vector.broadcast %13 : vector<32x1xf32> to vector<32x128xf32>
    %16 = arith.addf %14, %15 : vector<32x128xf32>
    %cst_9 = arith.constant 0.000000e+00 : f32
    %17 = vector.broadcast %cst_9 : f32 to vector<32x128xf32>
    %18 = arith.cmpf ogt, %16, %17 : vector<32x128xf32>
    %cst_10 = arith.constant 2.000000e-01 : f32
    %19 = vector.broadcast %cst_10 : f32 to vector<32x128xf32>
    %20 = arith.mulf %19, %16 : vector<32x128xf32>
    %21 = arith.select %18, %16, %20 : vector<32x128xi1>, vector<32x128xf32>
    %c32 = arith.constant 32 : index
    %c0_11 = arith.constant 0 : index
    %22 = vector.load %arg3[%c32, %c0_11] : memref<200x1xf32, #tpu.memory_space<vmem>>, vector<32x1xf32>
    %c64 = arith.constant 64 : index
    %c0_12 = arith.constant 0 : index
    %23 = vector.load %arg3[%c64, %c0_12] : memref<200x1xf32, #tpu.memory_space<vmem>>, vector<32x1xf32>
    %24 = vector.broadcast %22 : vector<32x1xf32> to vector<32x128xf32>
    %25 = arith.mulf %21, %24 : vector<32x128xf32>
    %26 = vector.broadcast %23 : vector<32x1xf32> to vector<32x128xf32>
    %27 = arith.addf %25, %26 : vector<32x128xf32>
    %cst_13 = arith.constant 0.000000e+00 : f32
    %28 = vector.broadcast %cst_13 : f32 to vector<32x128xf32>
    %29 = arith.cmpf ogt, %27, %28 : vector<32x128xf32>
    %cst_14 = arith.constant 2.000000e-01 : f32
    %30 = vector.broadcast %cst_14 : f32 to vector<32x128xf32>
    %31 = arith.mulf %30, %27 : vector<32x128xf32>
    %32 = arith.select %29, %27, %31 : vector<32x128xi1>, vector<32x128xf32>
    %c32_15 = arith.constant 32 : index
    %c0_16 = arith.constant 0 : index
    %33 = vector.load %arg2[%c32_15, %c0_16] : memref<88x32xf32, #tpu.memory_space<vmem>>, vector<32x32xf32>
    %c96 = arith.constant 96 : index
    %c0_17 = arith.constant 0 : index
    %34 = vector.load %arg3[%c96, %c0_17] : memref<200x1xf32, #tpu.memory_space<vmem>>, vector<32x1xf32>
    %cst_18 = arith.constant dense<0.000000e+00> : vector<32x128xf32>
    %35 = tpu.matmul %33, %32, %cst_18 {dimension_numbers = #tpu.dot_dimension_numbers<[1], [0], [0], [1], [0, 0, 1, 1], [], []>} : vector<32x32xf32>, vector<32x128xf32>, vector<32x128xf32> -> vector<32x128xf32>
    %36 = vector.broadcast %34 : vector<32x1xf32> to vector<32x128xf32>
    %37 = arith.addf %35, %36 : vector<32x128xf32>
    %cst_19 = arith.constant 0.000000e+00 : f32
    %38 = vector.broadcast %cst_19 : f32 to vector<32x128xf32>
    %39 = arith.cmpf ogt, %37, %38 : vector<32x128xf32>
    %cst_20 = arith.constant 2.000000e-01 : f32
    %40 = vector.broadcast %cst_20 : f32 to vector<32x128xf32>
    %41 = arith.mulf %40, %37 : vector<32x128xf32>
    %42 = arith.select %39, %37, %41 : vector<32x128xi1>, vector<32x128xf32>
    %c128 = arith.constant 128 : index
    %c0_21 = arith.constant 0 : index
    %43 = vector.load %arg3[%c128, %c0_21] : memref<200x1xf32, #tpu.memory_space<vmem>>, vector<32x1xf32>
    %c160 = arith.constant 160 : index
    %c0_22 = arith.constant 0 : index
    %44 = vector.load %arg3[%c160, %c0_22] : memref<200x1xf32, #tpu.memory_space<vmem>>, vector<32x1xf32>
    %45 = vector.broadcast %43 : vector<32x1xf32> to vector<32x128xf32>
    %46 = arith.mulf %42, %45 : vector<32x128xf32>
    %47 = vector.broadcast %44 : vector<32x1xf32> to vector<32x128xf32>
    %48 = arith.addf %46, %47 : vector<32x128xf32>
    %cst_23 = arith.constant 0.000000e+00 : f32
    %49 = vector.broadcast %cst_23 : f32 to vector<32x128xf32>
    %50 = arith.cmpf ogt, %48, %49 : vector<32x128xf32>
    %cst_24 = arith.constant 2.000000e-01 : f32
    %51 = vector.broadcast %cst_24 : f32 to vector<32x128xf32>
    %52 = arith.mulf %51, %48 : vector<32x128xf32>
    %53 = arith.select %50, %48, %52 : vector<32x128xi1>, vector<32x128xf32>
    %c64_25 = arith.constant 64 : index
    %c0_26 = arith.constant 0 : index
    %54 = vector.load %arg2[%c64_25, %c0_26] : memref<88x32xf32, #tpu.memory_space<vmem>>, vector<8x32xf32>
    %c192 = arith.constant 192 : index
    %c0_27 = arith.constant 0 : index
    %55 = vector.load %arg3[%c192, %c0_27] : memref<200x1xf32, #tpu.memory_space<vmem>>, vector<8x1xf32>
    %cst_28 = arith.constant dense<0.000000e+00> : vector<8x128xf32>
    %56 = tpu.matmul %54, %53, %cst_28 {dimension_numbers = #tpu.dot_dimension_numbers<[1], [0], [0], [1], [0, 0, 1, 1], [], []>} : vector<8x32xf32>, vector<32x128xf32>, vector<8x128xf32> -> vector<8x128xf32>
    %57 = vector.broadcast %55 : vector<8x1xf32> to vector<8x128xf32>
    %58 = arith.addf %56, %57 : vector<8x128xf32>
    %cst_29 = arith.constant 9.99999997E-7 : f32
    %59 = vector.broadcast %cst_29 : f32 to vector<8x128xf32>
    %60 = arith.maximumf %58, %59 : vector<8x128xf32>
    %cst_30 = arith.constant dense<0xFF800000> : vector<128xf32>
    %61 = vector.multi_reduction <maximumf>, %60, %cst_30 [0] : vector<8x128xf32> to vector<128xf32>
    %62 = vector.shape_cast %61 : vector<128xf32> to vector<1x128xf32>
    %63 = vector.broadcast %62 : vector<1x128xf32> to vector<8x128xf32>
    %64 = arith.subf %60, %63 : vector<8x128xf32>
    %65 = math.exp %64 : vector<8x128xf32>
    %cst_31 = arith.constant dense<0.000000e+00> : vector<128xf32>
    %66 = vector.multi_reduction <add>, %65, %cst_31 [0] : vector<8x128xf32> to vector<128xf32>
    %67 = vector.shape_cast %66 : vector<128xf32> to vector<1x128xf32>
    %68 = math.log %67 : vector<1x128xf32>
    %69 = vector.broadcast %68 : vector<1x128xf32> to vector<8x128xf32>
    %70 = arith.subf %64, %69 : vector<8x128xf32>
    %c0_32 = arith.constant 0 : index
    %c0_33 = arith.constant 0 : index
    %71 = vector.load %arg4[%c0_32, %c0_33] : memref<8x128xf32, #tpu.memory_space<vmem>>, vector<8x128xf32>
    tpu.vector_store %arg4[%c0_32, %c0_33], %70 {strides = array<i32>} : memref<8x128xf32, #tpu.memory_space<vmem>>, vector<8x128xf32>,
    return
  }
  func.func @transform_0(%arg0: i32) -> (i32, i32) {
    %c0_i32 = arith.constant 0 : i32
    %c0_i32_0 = arith.constant 0 : i32
    return %arg0, %c0_i32 : i32, i32
  }
  func.func @transform_1(%arg0: i32) -> (i32, i32) {
    %c0_i32 = arith.constant 0 : i32
    %c0_i32_0 = arith.constant 0 : i32
    %c0_i32_1 = arith.constant 0 : i32
    return %c0_i32, %c0_i32_0 : i32, i32
  }
  func.func @transform_2(%arg0: i32) -> (i32, i32) {
    %c0_i32 = arith.constant 0 : i32
    %c0_i32_0 = arith.constant 0 : i32
    %c0_i32_1 = arith.constant 0 : i32
    return %c0_i32, %c0_i32_0 : i32, i32
  }
  func.func @transform_3(%arg0: i32) -> (i32, i32) {
    %c0_i32 = arith.constant 0 : i32
    %c0_i32_0 = arith.constant 0 : i32
    return %c0_i32, %arg0 : i32, i32
  }
}

</mosaic_0001>

<llo_original>
// kernel: tpu_custom_call.1
$region0: #{tpu_custom_call.1}
  #allocation0 [shape = 'u32[]', space=smem, size = 0x4, offset = 0x4, fixed_abs, tag = 'smem constant byte address 0x4 - core index']
  #allocation1 [shape = 'u32[144,128]{1,0:T(1,128)}', space=vmem, size = 0x12000, scoped, tag = 'internal scratch']
  %s0 = inlined_call_operand.vmem [shape: f32[8,16], index: 0, kind: input, shape index: {}]
  %s1 = inlined_call_operand.vmem [shape: f32[88,32], index: 1, kind: input, shape index: {}]
  %s2 = inlined_call_operand.vmem [shape: f32[200,1], index: 2, kind: input, shape index: {}]
  %s3 = inlined_call_operand.hbm [shape: f32[8,8], index: 3, kind: output, shape index: {}]
  %s4 = sld [smem:[#allocation0]]
  $region22: #{tpu_custom_call.1} parent=0
    _
  %s6 = ssub.s32 1, %s4
  %s7 = scalar_select 0, %s6, %s4
  $region1: #{tpu_custom_call.1} parent=0
    #allocation2 [shape = 'u8[4096]{0}', space=vmem, size = 0x1000, scoped, tag = 'output window, operand 0, single buffered']
    #allocation3 [shape = 's32[1]{0}', space=sflag, size = 0x4, scoped, tag = 'scoped memory for tpu_custom_call.1']
    %8 = vsyncpa [#allocation3], 0
    // Predicated region
    $region2: #{tpu_custom_call.1} parent=1 // pred_check
      _
    $region3: #{tpu_custom_call.1} parent=1 // pred_check_branch
      %10 = sbr.rel (0) target = $region5
    $region4: #{tpu_custom_call.1} parent=1 // pred_region
      _
    $region5: #{tpu_custom_call.1} parent=1 // pred_fallthru
      _
    // Predicated region
    $region6: #{tpu_custom_call.1} parent=1 // pred_check
      _
    $region7: #{tpu_custom_call.1} parent=1 // pred_check_branch
      %12 = sbr.rel (0) target = $region9
    $region8: #{tpu_custom_call.1} parent=1 // pred_region
      _
    $region9: #{tpu_custom_call.1} parent=1 // pred_fallthru
      _
    // Predicated region
    $region10: #{tpu_custom_call.1} parent=1 // pred_check
      _
    $region11: #{tpu_custom_call.1} parent=1 // pred_check_branch
      %14 = sbr.rel (0) target = $region13
    $region12: #{tpu_custom_call.1} parent=1 // pred_region
      _
    $region13: #{tpu_custom_call.1} parent=1 // pred_fallthru
      _
    %v15 = vld [vmem:[%s0] sm:$0xff]
    %v16 = vld [vmem:[%s0 + $0x8] sm:$0xff]
    %v17 = vld [vmem:[%s0 + $0x10] sm:$0xff]
    %v18 = vld [vmem:[%s0 + $0x18] sm:$0xff]
    %v19 = vld [vmem:[%s0 + $0x20] sm:$0xff]
    %v20 = vld [vmem:[%s0 + $0x28] sm:$0xff]
    %v21 = vld [vmem:[%s0 + $0x30] sm:$0xff]
    %v22 = vld [vmem:[%s0 + $0x38] sm:$0xff]
    %v23 = vld [vmem:[%s0 + $0x40] sm:$0xff]
    %v24 = vld [vmem:[%s0 + $0x48] sm:$0xff]
    %v25 = vld [vmem:[%s0 + $0x50] sm:$0xff]
    %v26 = vld [vmem:[%s0 + $0x58] sm:$0xff]
    %v27 = vld [vmem:[%s0 + $0x60] sm:$0xff]
    %v28 = vld [vmem:[%s0 + $0x68] sm:$0xff]
    %v29 = vld [vmem:[%s0 + $0x70] sm:$0xff]
    %v30 = vld [vmem:[%s0 + $0x78] sm:$0xff]
    %v31 = vld [vmem:[%s1 + $0x48] sm:$0x1]
    %v32 = vld [vmem:[%s1 + $0x50] sm:$0x1]
    %v33 = vlaneseq
    %v34 = vshrl.u32 %v33, 7
    %v35 = vsub.s32 0, %v34
    %v36 = vrot.slane %v31, %v35
    %v37 = vmul.f32 %v15, %v36
    %v38 = vmul.f32 %v16, %v36
    %v39 = vmul.f32 %v17, %v36
    %v40 = vmul.f32 %v18, %v36
    %v41 = vmul.f32 %v19, %v36
    %v42 = vmul.f32 %v20, %v36
    %v43 = vmul.f32 %v21, %v36
    %v44 = vmul.f32 %v22, %v36
    %v45 = vmul.f32 %v23, %v36
    %v46 = vmul.f32 %v24, %v36
    %v47 = vmul.f32 %v25, %v36
    %v48 = vmul.f32 %v26, %v36
    %v49 = vmul.f32 %v27, %v36
    %v50 = vmul.f32 %v28, %v36
    %v51 = vmul.f32 %v29, %v36
    %v52 = vmul.f32 %v30, %v36
    %v53 = vlaneseq
    %v54 = vshrl.u32 %v53, 7
    %v55 = vsub.s32 0, %v54
    %v56 = vrot.slane %v32, %v55
    %v57 = vadd.f32 %v37, %v56
    %v58 = vadd.f32 %v38, %v56
    %v59 = vadd.f32 %v39, %v56
    %v60 = vadd.f32 %v40, %v56
    %v61 = vadd.f32 %v41, %v56
    %v62 = vadd.f32 %v42, %v56
    %v63 = vadd.f32 %v43, %v56
    %v64 = vadd.f32 %v44, %v56
    %v65 = vadd.f32 %v45, %v56
    %v66 = vadd.f32 %v46, %v56
    %v67 = vadd.f32 %v47, %v56
    %v68 = vadd.f32 %v48, %v56
    %v69 = vadd.f32 %v49, %v56
    %v70 = vadd.f32 %v50, %v56
    %v71 = vadd.f32 %v51, %v56
    %v72 = vadd.f32 %v52, %v56
    %vm73 = vcmp.gt.f32.partialorder %v57, 0.0
    %vm74 = vcmp.gt.f32.partialorder %v58, 0.0
    %vm75 = vcmp.gt.f32.partialorder %v59, 0.0
    %vm76 = vcmp.gt.f32.partialorder %v60, 0.0
    %vm77 = vcmp.gt.f32.partialorder %v61, 0.0
    %vm78 = vcmp.gt.f32.partialorder %v62, 0.0
    %vm79 = vcmp.gt.f32.partialorder %v63, 0.0
    %vm80 = vcmp.gt.f32.partialorder %v64, 0.0
    %vm81 = vcmp.gt.f32.partialorder %v65, 0.0
    %vm82 = vcmp.gt.f32.partialorder %v66, 0.0
    %vm83 = vcmp.gt.f32.partialorder %v67, 0.0
    %vm84 = vcmp.gt.f32.partialorder %v68, 0.0
    %vm85 = vcmp.gt.f32.partialorder %v69, 0.0
    %vm86 = vcmp.gt.f32.partialorder %v70, 0.0
    %vm87 = vcmp.gt.f32.partialorder %v71, 0.0
    %vm88 = vcmp.gt.f32.partialorder %v72, 0.0
    %v89 = vmul.f32 %v57, 0.2
    %v90 = vmul.f32 %v58, 0.2
    %v91 = vmul.f32 %v59, 0.2
    %v92 = vmul.f32 %v60, 0.2
    %v93 = vmul.f32 %v61, 0.2
    %v94 = vmul.f32 %v62, 0.2
    %v95 = vmul.f32 %v63, 0.2
    %v96 = vmul.f32 %v64, 0.2
    %v97 = vmul.f32 %v65, 0.2
    %v98 = vmul.f32 %v66, 0.2
    %v99 = vmul.f32 %v67, 0.2
    %v100 = vmul.f32 %v68, 0.2
    %v101 = vmul.f32 %v69, 0.2
    %v102 = vmul.f32 %v70, 0.2
    %v103 = vmul.f32 %v71, 0.2
    %v104 = vmul.f32 %v72, 0.2
    %v105 = vsel %vm73, %v57, %v89
    %v106 = vsel %vm74, %v58, %v90
    %v107 = vsel %vm75, %v59, %v91
    %v108 = vsel %vm76, %v60, %v92
    %v109 = vsel %vm77, %v61, %v93
    %v110 = vsel %vm78, %v62, %v94
    %v111 = vsel %vm79, %v63, %v95
    %v112 = vsel %vm80, %v64, %v96
    %v113 = vsel %vm81, %v65, %v97
    %v114 = vsel %vm82, %v66, %v98
    %v115 = vsel %vm83, %v67, %v99
    %v116 = vsel %vm84, %v68, %v100
    %v117 = vsel %vm85, %v69, %v101
    %v118 = vsel %vm86, %v70, %v102
    %v119 = vsel %vm87, %v71, %v103
    %v120 = vsel %vm88, %v72, %v104
    %v121 = vld [vmem:[%s1] sm:$0xff]
    %v122 = vld [vmem:[%s1 + $0x8] sm:$0xff]
    %v123 = vld [vmem:[%s1 + $0x10] sm:$0xff]
    %v124 = vld [vmem:[%s1 + $0x18] sm:$0xff]
    %v125 = vld [vmem:[%s2] sm:$0xff]
    %v126 = vld [vmem:[%s2 + $0x8] sm:$0xff]
    %v127 = vld [vmem:[%s2 + $0x10] sm:$0xff]
    %v128 = vld [vmem:[%s2 + $0x18] sm:$0xff]
    %130 = vset.pattern.permute.xlu0 0
    %131 = vperm.xlu0 %130, %v125
    %v132 = vpop.permute.xlu0 %131
    %135 = vset.pattern.permute.xlu0 0
    %136 = vperm.xlu0 %135, %v126
    %v137 = vpop.permute.xlu0 %136
    %140 = vset.pattern.permute.xlu0 0
    %141 = vperm.xlu0 %140, %v127
    %v142 = vpop.permute.xlu0 %141
    %145 = vset.pattern.permute.xlu0 0
    %146 = vperm.xlu0 %145, %v128
    %v147 = vpop.permute.xlu0 %146
    %vm149 = vcmask 130048
    %v151 = vsel %vm149, %v121, 0
    %v154 = vsel %vm149, %v122, 0
    %v157 = vsel %vm149, %v123, 0
    %v160 = vsel %vm149, %v124, 0
    %v163 = vsel %vm149, %v105, 0
    %v166 = vsel %vm149, %v106, 0
    %v169 = vsel %vm149, %v107, 0
    %v172 = vsel %vm149, %v108, 0
    %v175 = vsel %vm149, %v109, 0
    %v178 = vsel %vm149, %v110, 0
    %v181 = vsel %vm149, %v111, 0
    %v184 = vsel %vm149, %v112, 0
    %v187 = vsel %vm149, %v113, 0
    %v190 = vsel %vm149, %v114, 0
    %v193 = vsel %vm149, %v115, 0
    %v196 = vsel %vm149, %v116, 0
    %v199 = vsel %vm149, %v117, 0
    %v202 = vsel %vm149, %v118, 0
    %v205 = vsel %vm149, %v119, 0
    %v208 = vsel %vm149, %v120, 0
    %210 = vmatprep.subr.mxu0 0.0
    %211 = vmatpush1.xpose.msra.mxu0 %v163
    %212 = vmatprep.subr.mxu0 0.0
    %213 = vmatpush1.xpose.msra.mxu0 %v166
    %214 = vmatprep.subr.mxu0 0.0
    %215 = vmatpush1.xpose.msra.mxu0 %v169
    %216 = vmatprep.subr.mxu0 0.0
    %217 = vmatpush1.xpose.msra.mxu0 %v172
    %218 = vmatprep.subr.mxu0 0.0
    %219 = vmatpush1.xpose.msra.mxu0 %v175
    %220 = vmatprep.subr.mxu0 0.0
    %221 = vmatpush1.xpose.msra.mxu0 %v178
    %222 = vmatprep.subr.mxu0 0.0
    %223 = vmatpush1.xpose.msra.mxu0 %v181
    %224 = vmatprep.subr.mxu0 0.0
    %225 = vmatpush1.xpose.msra.mxu0 %v184
    %226 = vmatprep.subr.mxu0 0.0
    %227 = vmatpush1.xpose.msra.mxu0 %v187
    %228 = vmatprep.subr.mxu0 0.0
    %229 = vmatpush1.xpose.msra.mxu0 %v190
    %230 = vmatprep.subr.mxu0 0.0
    %231 = vmatpush1.xpose.msra.mxu0 %v193
    %232 = vmatprep.subr.mxu0 0.0
    %233 = vmatpush1.xpose.msra.mxu0 %v196
    %234 = vmatprep.subr.mxu0 0.0
    %235 = vmatpush1.xpose.msra.mxu0 %v199
    %236 = vmatprep.subr.mxu0 0.0
    %237 = vmatpush1.xpose.msra.mxu0 %v202
    %238 = vmatprep.subr.mxu0 0.0
    %239 = vmatpush1.xpose.msra.mxu0 %v205
    %240 = vmatprep.subr.mxu0 0.0
    %241 = vmatpush1.xpose.msra.mxu0 %v208
    %242 = vmatprep.subr.mxu0 0.0
    %243 = vmatpush1.xpose.msra.mxu0 0.0
    %244 = vmatprep.subr.mxu0 0.0
    %245 = vmatpush1.xpose.msra.mxu0 0.0
    %246 = vmatprep.subr.mxu0 0.0
    %247 = vmatpush1.xpose.msra.mxu0 0.0
    %248 = vmatprep.subr.mxu0 0.0
    %249 = vmatpush1.xpose.msra.mxu0 0.0
    %250 = vmatprep.subr.mxu0 0.0
    %251 = vmatpush1.xpose.msra.mxu0 0.0
    %252 = vmatprep.subr.mxu0 0.0
    %253 = vmatpush1.xpose.msra.mxu0 0.0
    %254 = vmatprep.subr.mxu0 0.0
    %255 = vmatpush1.xpose.msra.mxu0 0.0
    %256 = vmatprep.subr.mxu0 0.0
    %257 = vmatpush1.xpose.msra.mxu0 0.0
    %258 = vmatprep.subr.mxu0 0.0
    %259 = vmatpush1.xpose.msra.mxu0 0.0
    %260 = vmatprep.subr.mxu0 0.0
    %261 = vmatpush1.xpose.msra.mxu0 0.0
    %262 = vmatprep.subr.mxu0 0.0
    %263 = vmatpush1.xpose.msra.mxu0 0.0
    %264 = vmatprep.subr.mxu0 0.0
    %265 = vmatpush1.xpose.msra.mxu0 0.0
    %266 = vmatprep.subr.mxu0 0.0
    %267 = vmatpush1.xpose.msra.mxu0 0.0
    %268 = vmatprep.subr.mxu0 0.0
    %269 = vmatpush1.xpose.msra.mxu0 0.0
    %270 = vmatprep.subr.mxu0 0.0
    %271 = vmatpush1.xpose.msra.mxu0 0.0
    %272 = vmatprep.subr.mxu0 0.0
    %273 = vmatpush1.xpose.msra.mxu0 0.0
    %274 = vmatprep.mubr.f32.mxu0 0.0
    %275 = vmatmul.mubr.f32.gmra.mrb[0].mxu0 %v151
    %v276 = vpop.f32.mrb[0].mxu0
    %v277 = vadd.f32 %v132, %v276
    %v278 = vpop.f32.mrb[0].mxu0
    %279 = vmatprep.mubr.f32.mxu0 0.0
    %280 = vmatmul.mubr.f32.gmra.mrb[0].mxu0 %v154
    %v281 = vpop.f32.mrb[0].mxu0
    %v282 = vadd.f32 %v137, %v281
    %v283 = vpop.f32.mrb[0].mxu0
    %284 = vmatprep.mubr.f32.mxu0 0.0
    %285 = vmatmul.mubr.f32.gmra.mrb[0].mxu0 %v157
    %v286 = vpop.f32.mrb[0].mxu0
    %v287 = vadd.f32 %v142, %v286
    %v288 = vpop.f32.mrb[0].mxu0
    %289 = vmatprep.mubr.f32.mxu0 0.0
    %290 = vmatmul.mubr.f32.gmra.mrb[0].mxu0 %v160
    %v291 = vpop.f32.mrb[0].mxu0
    %v292 = vadd.f32 %v147, %v291
    %v293 = vpop.f32.mrb[0].mxu0
    %294 = vdwg.mxu0
    %vm295 = vcmp.gt.f32.partialorder %v277, 0.0
    %vm296 = vcmp.gt.f32.partialorder %v282, 0.0
    %vm297 = vcmp.gt.f32.partialorder %v287, 0.0
    %vm298 = vcmp.gt.f32.partialorder %v292, 0.0
    %v299 = vmul.f32 %v277, 0.2
    %v300 = vmul.f32 %v282, 0.2
    %v301 = vmul.f32 %v287, 0.2
    %v302 = vmul.f32 %v292, 0.2
    %v303 = vsel %vm295, %v277, %v299
    %v304 = vsel %vm296, %v282, %v300
    %v305 = vsel %vm297, %v287, %v301
    %v306 = vsel %vm298, %v292, %v302
    %v307 = vld [vmem:[%s2 + $0x20] sm:$0xff]
    %v308 = vld [vmem:[%s2 + $0x28] sm:$0xff]
    %v309 = vld [vmem:[%s2 + $0x30] sm:$0xff]
    %v310 = vld [vmem:[%s2 + $0x38] sm:$0xff]
    %v311 = vld [vmem:[%s2 + $0x40] sm:$0xff]
    %v312 = vld [vmem:[%s2 + $0x48] sm:$0xff]
    %v313 = vld [vmem:[%s2 + $0x50] sm:$0xff]
    %v314 = vld [vmem:[%s2 + $0x58] sm:$0xff]
    %316 = vset.pattern.permute.xlu0 0
    %317 = vperm.xlu0 %316, %v307
    %v318 = vpop.permute.xlu0 %317
    %321 = vset.pattern.permute.xlu0 0
    %322 = vperm.xlu0 %321, %v308
    %v323 = vpop.permute.xlu0 %322
    %326 = vset.pattern.permute.xlu0 0
    %327 = vperm.xlu0 %326, %v309
    %v328 = vpop.permute.xlu0 %327
    %331 = vset.pattern.permute.xlu0 0
    %332 = vperm.xlu0 %331, %v310
    %v333 = vpop.permute.xlu0 %332
    %v335 = vmul.f32 %v303, %v318
    %v336 = vmul.f32 %v304, %v323
    %v337 = vmul.f32 %v305, %v328
    %v338 = vmul.f32 %v306, %v333
    %340 = vset.pattern.permute.xlu0 0
    %341 = vperm.xlu0 %340, %v311
    %v342 = vpop.permute.xlu0 %341
    %345 = vset.pattern.permute.xlu0 0
    %346 = vperm.xlu0 %345, %v312
    %v347 = vpop.permute.xlu0 %346
    %350 = vset.pattern.permute.xlu0 0
    %351 = vperm.xlu0 %350, %v313
    %v352 = vpop.permute.xlu0 %351
    %355 = vset.pattern.permute.xlu0 0
    %356 = vperm.xlu0 %355, %v314
    %v357 = vpop.permute.xlu0 %356
    %v359 = vadd.f32 %v335, %v342
    %v360 = vadd.f32 %v336, %v347
    %v361 = vadd.f32 %v337, %v352
    %v362 = vadd.f32 %v338, %v357
    %vm363 = vcmp.gt.f32.partialorder %v359, 0.0
    %vm364 = vcmp.gt.f32.partialorder %v360, 0.0
    %vm365 = vcmp.gt.f32.partialorder %v361, 0.0
    %vm366 = vcmp.gt.f32.partialorder %v362, 0.0
    %v367 = vmul.f32 %v359, 0.2
    %v368 = vmul.f32 %v360, 0.2
    %v369 = vmul.f32 %v361, 0.2
    %v370 = vmul.f32 %v362, 0.2
    %v371 = vsel %vm363, %v359, %v367
    %v372 = vsel %vm364, %v360, %v368
    %v373 = vsel %vm365, %v361, %v369
    %v374 = vsel %vm366, %v362, %v370
    %v375 = vld [vmem:[%s1 + $0x20] sm:$0xff]
    %v376 = vld [vmem:[%s1 + $0x28] sm:$0xff]
    %v377 = vld [vmem:[%s1 + $0x30] sm:$0xff]
    %v378 = vld [vmem:[%s1 + $0x38] sm:$0xff]
    %v379 = vld [vmem:[%s2 + $0x60] sm:$0xff]
    %v380 = vld [vmem:[%s2 + $0x68] sm:$0xff]
    %v381 = vld [vmem:[%s2 + $0x70] sm:$0xff]
    %v382 = vld [vmem:[%s2 + $0x78] sm:$0xff]
    %384 = vset.pattern.permute.xlu0 0
    %385 = vperm.xlu0 %384, %v379
    %v386 = vpop.permute.xlu0 %385
    %389 = vset.pattern.permute.xlu0 0
    %390 = vperm.xlu0 %389, %v380
    %v391 = vpop.permute.xlu0 %390
    %394 = vset.pattern.permute.xlu0 0
    %395 = vperm.xlu0 %394, %v381
    %v396 = vpop.permute.xlu0 %395
    %399 = vset.pattern.permute.xlu0 0
    %400 = vperm.xlu0 %399, %v382
    %v401 = vpop.permute.xlu0 %400
    %vm403 = vcmask 261120
    %v405 = vsel %vm403, %v375, 0
    %v408 = vsel %vm403, %v376, 0
    %v411 = vsel %vm403, %v377, 0
    %v414 = vsel %vm403, %v378, 0
    %416 = vmatprep.subr.mxu0 0.0
    %417 = vmatpush1.msra.mxu0 %v371
    %418 = vmatprep.subr.mxu0 0.0
    %419 = vmatpush1.msra.mxu0 %v372
    %420 = vmatprep.subr.mxu0 0.0
    %421 = vmatpush1.msra.mxu0 %v373
    %422 = vmatprep.subr.mxu0 0.0
    %423 = vmatpush1.msra.mxu0 %v374
    %424 = vmatprep.subr.mxu0 0.0
    %425 = vmatpush1.msra.mxu0 0.0
    %426 = vmatprep.subr.mxu0 0.0
    %427 = vmatpush1.msra.mxu0 0.0
    %428 = vmatprep.subr.mxu0 0.0
    %429 = vmatpush1.msra.mxu0 0.0
    %430 = vmatprep.subr.mxu0 0.0
    %431 = vmatpush1.msra.mxu0 0.0
    %432 = vmatprep.subr.mxu0 0.0
    %433 = vmatpush1.msra.mxu0 0.0
    %434 = vmatprep.subr.mxu0 0.0
    %435 = vmatpush1.msra.mxu0 0.0
    %436 = vmatprep.subr.mxu0 0.0
    %437 = vmatpush1.msra.mxu0 0.0
    %438 = vmatprep.subr.mxu0 0.0
    %439 = vmatpush1.msra.mxu0 0.0
    %440 = vmatprep.subr.mxu0 0.0
    %441 = vmatpush1.msra.mxu0 0.0
    %442 = vmatprep.subr.mxu0 0.0
    %443 = vmatpush1.msra.mxu0 0.0
    %444 = vmatprep.subr.mxu0 0.0
    %445 = vmatpush1.msra.mxu0 0.0
    %446 = vmatprep.subr.mxu0 0.0
    %447 = vmatpush1.msra.mxu0 0.0
    %448 = vmatprep.subr.mxu0 0.0
    %449 = vmatpush1.msra.mxu0 0.0
    %450 = vmatprep.subr.mxu0 0.0
    %451 = vmatpush1.msra.mxu0 0.0
    %452 = vmatprep.subr.mxu0 0.0
    %453 = vmatpush1.msra.mxu0 0.0
    %454 = vmatprep.subr.mxu0 0.0
    %455 = vmatpush1.msra.mxu0 0.0
    %456 = vmatprep.subr.mxu0 0.0
    %457 = vmatpush1.msra.mxu0 0.0
    %458 = vmatprep.subr.mxu0 0.0
    %459 = vmatpush1.msra.mxu0 0.0
    %460 = vmatprep.subr.mxu0 0.0
    %461 = vmatpush1.msra.mxu0 0.0
    %462 = vmatprep.subr.mxu0 0.0
    %463 = vmatpush1.msra.mxu0 0.0
    %464 = vmatprep.subr.mxu0 0.0
    %465 = vmatpush1.msra.mxu0 0.0
    %466 = vmatprep.subr.mxu0 0.0
    %467 = vmatpush1.msra.mxu0 0.0
    %468 = vmatprep.subr.mxu0 0.0
    %469 = vmatpush1.msra.mxu0 0.0
    %470 = vmatprep.subr.mxu0 0.0
    %471 = vmatpush1.msra.mxu0 0.0
    %472 = vmatprep.subr.mxu0 0.0
    %473 = vmatpush1.msra.mxu0 0.0
    %474 = vmatprep.subr.mxu0 0.0
    %475 = vmatpush1.msra.mxu0 0.0
    %476 = vmatprep.subr.mxu0 0.0
    %477 = vmatpush1.msra.mxu0 0.0
    %478 = vmatprep.subr.mxu0 0.0
    %479 = vmatpush1.msra.mxu0 0.0
    %480 = vmatprep.mubr.f32.mxu0 0.0
    %481 = vmatmul.mubr.f32.gmra.mrb[0].mxu0 %v405
    %v482 = vpop.f32.mrb[0].mxu0
    %v483 = vadd.f32 %v386, %v482
    %v484 = vpop.f32.mrb[0].mxu0
    %485 = vmatprep.mubr.f32.mxu0 0.0
    %486 = vmatmul.mubr.f32.gmra.mrb[0].mxu0 %v408
    %v487 = vpop.f32.mrb[0].mxu0
    %v488 = vadd.f32 %v391, %v487
    %v489 = vpop.f32.mrb[0].mxu0
    %490 = vmatprep.mubr.f32.mxu0 0.0
    %491 = vmatmul.mubr.f32.gmra.mrb[0].mxu0 %v411
    %v492 = vpop.f32.mrb[0].mxu0
    %v493 = vadd.f32 %v396, %v492
    %v494 = vpop.f32.mrb[0].mxu0
    %495 = vmatprep.mubr.f32.mxu0 0.0
    %496 = vmatmul.mubr.f32.gmra.mrb[0].mxu0 %v414
    %v497 = vpop.f32.mrb[0].mxu0
    %v498 = vadd.f32 %v401, %v497
    %v499 = vpop.f32.mrb[0].mxu0
    %500 = vdwg.mxu0
    %vm501 = vcmp.gt.f32.partialorder %v483, 0.0
    %vm502 = vcmp.gt.f32.partialorder %v488, 0.0
    %vm503 = vcmp.gt.f32.partialorder %v493, 0.0
    %vm504 = vcmp.gt.f32.partialorder %v498, 0.0
    %v505 = vmul.f32 %v483, 0.2
    %v506 = vmul.f32 %v488, 0.2
    %v507 = vmul.f32 %v493, 0.2
    %v508 = vmul.f32 %v498, 0.2
    %v509 = vsel %vm501, %v483, %v505
    %v510 = vsel %vm502, %v488, %v506
    %v511 = vsel %vm503, %v493, %v507
    %v512 = vsel %vm504, %v498, %v508
    %v513 = vld [vmem:[%s2 + $0x80] sm:$0xff]
    %v514 = vld [vmem:[%s2 + $0x88] sm:$0xff]
    %v515 = vld [vmem:[%s2 + $0x90] sm:$0xff]
    %v516 = vld [vmem:[%s2 + $0x98] sm:$0xff]
    %v517 = vld [vmem:[%s2 + $0xa0] sm:$0xff]
    %v518 = vld [vmem:[%s2 + $0xa8] sm:$0xff]
    %v519 = vld [vmem:[%s2 + $0xb0] sm:$0xff]
    %v520 = vld [vmem:[%s2 + $0xb8] sm:$0xff]
    %522 = vset.pattern.permute.xlu0 0
    %523 = vperm.xlu0 %522, %v513
    %v524 = vpop.permute.xlu0 %523
    %527 = vset.pattern.permute.xlu0 0
    %528 = vperm.xlu0 %527, %v514
    %v529 = vpop.permute.xlu0 %528
    %532 = vset.pattern.permute.xlu0 0
    %533 = vperm.xlu0 %532, %v515
    %v534 = vpop.permute.xlu0 %533
    %537 = vset.pattern.permute.xlu0 0
    %538 = vperm.xlu0 %537, %v516
    %v539 = vpop.permute.xlu0 %538
    %v541 = vmul.f32 %v509, %v524
    %v542 = vmul.f32 %v510, %v529
    %v543 = vmul.f32 %v511, %v534
    %v544 = vmul.f32 %v512, %v539
    %546 = vset.pattern.permute.xlu0 0
    %547 = vperm.xlu0 %546, %v517
    %v548 = vpop.permute.xlu0 %547
    %551 = vset.pattern.permute.xlu0 0
    %552 = vperm.xlu0 %551, %v518
    %v553 = vpop.permute.xlu0 %552
    %556 = vset.pattern.permute.xlu0 0
    %557 = vperm.xlu0 %556, %v519
    %v558 = vpop.permute.xlu0 %557
    %561 = vset.pattern.permute.xlu0 0
    %562 = vperm.xlu0 %561, %v520
    %v563 = vpop.permute.xlu0 %562
    %v565 = vadd.f32 %v541, %v548
    %v566 = vadd.f32 %v542, %v553
    %v567 = vadd.f32 %v543, %v558
    %v568 = vadd.f32 %v544, %v563
    %vm569 = vcmp.gt.f32.partialorder %v565, 0.0
    %vm570 = vcmp.gt.f32.partialorder %v566, 0.0
    %vm571 = vcmp.gt.f32.partialorder %v567, 0.0
    %vm572 = vcmp.gt.f32.partialorder %v568, 0.0
    %v573 = vmul.f32 %v565, 0.2
    %v574 = vmul.f32 %v566, 0.2
    %v575 = vmul.f32 %v567, 0.2
    %v576 = vmul.f32 %v568, 0.2
    %v577 = vsel %vm569, %v565, %v573
    %v578 = vsel %vm570, %v566, %v574
    %v579 = vsel %vm571, %v567, %v575
    %v580 = vsel %vm572, %v568, %v576
    %v581 = vld [vmem:[%s1 + $0x40] sm:$0xff]
    %v582 = vld [vmem:[%s2 + $0xc0] sm:$0xff]
    %584 = vset.pattern.permute.xlu0 0
    %585 = vperm.xlu0 %584, %v582
    %v586 = vpop.permute.xlu0 %585
    %v589 = vsel %vm403, %v581, 0
    %591 = vmatprep.subr.mxu0 0.0
    %592 = vmatpush1.msra.mxu0 %v577
    %593 = vmatprep.subr.mxu0 0.0
    %594 = vmatpush1.msra.mxu0 %v578
    %595 = vmatprep.subr.mxu0 0.0
    %596 = vmatpush1.msra.mxu0 %v579
    %597 = vmatprep.subr.mxu0 0.0
    %598 = vmatpush1.msra.mxu0 %v580
    %599 = vmatprep.subr.mxu0 0.0
    %600 = vmatpush1.msra.mxu0 0.0
    %601 = vmatprep.subr.mxu0 0.0
    %602 = vmatpush1.msra.mxu0 0.0
    %603 = vmatprep.subr.mxu0 0.0
    %604 = vmatpush1.msra.mxu0 0.0
    %605 = vmatprep.subr.mxu0 0.0
    %606 = vmatpush1.msra.mxu0 0.0
    %607 = vmatprep.subr.mxu0 0.0
    %608 = vmatpush1.msra.mxu0 0.0
    %609 = vmatprep.subr.mxu0 0.0
    %610 = vmatpush1.msra.mxu0 0.0
    %611 = vmatprep.subr.mxu0 0.0
    %612 = vmatpush1.msra.mxu0 0.0
    %613 = vmatprep.subr.mxu0 0.0
    %614 = vmatpush1.msra.mxu0 0.0
    %615 = vmatprep.subr.mxu0 0.0
    %616 = vmatpush1.msra.mxu0 0.0
    %617 = vmatprep.subr.mxu0 0.0
    %618 = vmatpush1.msra.mxu0 0.0
    %619 = vmatprep.subr.mxu0 0.0
    %620 = vmatpush1.msra.mxu0 0.0
    %621 = vmatprep.subr.mxu0 0.0
    %622 = vmatpush1.msra.mxu0 0.0
    %623 = vmatprep.subr.mxu0 0.0
    %624 = vmatpush1.msra.mxu0 0.0
    %625 = vmatprep.subr.mxu0 0.0
    %626 = vmatpush1.msra.mxu0 0.0
    %627 = vmatprep.subr.mxu0 0.0
    %628 = vmatpush1.msra.mxu0 0.0
    %629 = vmatprep.subr.mxu0 0.0
    %630 = vmatpush1.msra.mxu0 0.0
    %631 = vmatprep.subr.mxu0 0.0
    %632 = vmatpush1.msra.mxu0 0.0
    %633 = vmatprep.subr.mxu0 0.0
    %634 = vmatpush1.msra.mxu0 0.0
    %635 = vmatprep.subr.mxu0 0.0
    %636 = vmatpush1.msra.mxu0 0.0
    %637 = vmatprep.subr.mxu0 0.0
    %638 = vmatpush1.msra.mxu0 0.0
    %639 = vmatprep.subr.mxu0 0.0
    %640 = vmatpush1.msra.mxu0 0.0
    %641 = vmatprep.subr.mxu0 0.0
    %642 = vmatpush1.msra.mxu0 0.0
    %643 = vmatprep.subr.mxu0 0.0
    %644 = vmatpush1.msra.mxu0 0.0
    %645 = vmatprep.subr.mxu0 0.0
    %646 = vmatpush1.msra.mxu0 0.0
    %647 = vmatprep.subr.mxu0 0.0
    %648 = vmatpush1.msra.mxu0 0.0
    %649 = vmatprep.subr.mxu0 0.0
    %650 = vmatpush1.msra.mxu0 0.0
    %651 = vmatprep.subr.mxu0 0.0
    %652 = vmatpush1.msra.mxu0 0.0
    %653 = vmatprep.subr.mxu0 0.0
    %654 = vmatpush1.msra.mxu0 0.0
    %655 = vmatprep.mubr.f32.mxu0 0.0
    %656 = vmatmul.mubr.f32.gmra.mrb[0].mxu0 %v589
    %v657 = vpop.f32.mrb[0].mxu0
    %v658 = vadd.f32 %v586, %v657
    %v659 = vpop.f32.mrb[0].mxu0
    %660 = vdwg.mxu0
    %v661 = vmax.f32 %v658, 1e-06
    %v662 = vrot.slane %v661, 4
    %v663 = vmax.f32 %v661, %v662
    %v664 = vrot.slane %v663, 2
    %v665 = vmax.f32 %v663, %v664
    %v666 = vrot.slane %v665, 1
    %v667 = vmax.f32 %v665, %v666
    %v668 = vsub.f32 %v661, %v667
    %v669 = vmul.f32 %v668, 1.442695
    %v670 = vpow.pop %v669
    %v671 = vrot.slane %v670, 4
    %v672 = vadd.f32 %v670, %v671
    %v673 = vrot.slane %v672, 2
    %v674 = vadd.f32 %v672, %v673
    %v675 = vrot.slane %v674, 1
    %v676 = vadd.f32 %v674, %v675
    %v677 = vlog2.pop %v676
    %v678 = vmul.f32 %v677, 0.6931472
    %v679 = vsub.f32 %v668, %v678
    %680 = vst [vmem:[#allocation2] sm:$0xff] %v679
    // Predicated region
    $region14: #{tpu_custom_call.1} parent=1 // pred_check
      _
    $region15: #{tpu_custom_call.1} parent=1 // pred_check_branch
      %682 = sbr.rel (0) target = $region17
    $region16: #{tpu_custom_call.1} parent=1 // pred_region
      %s684 = ssub.s32 128, 128
      %685 = vsyncadd [#allocation3], %s684
      %s687 = sshll.u32 [#allocation2], 4
      %s688 = int_to_ptr.vmem [resolvable:$true] %s687
      %690 = dma.vmem_to_hbm [thread:$0]  %s688, 128, %s3, [#allocation3]
    $region17: #{tpu_custom_call.1} parent=1 // pred_fallthru
      _
    // Predicated region
    $region18: #{tpu_custom_call.1} parent=1 // pred_check
      _
    $region19: #{tpu_custom_call.1} parent=1 // pred_check_branch
      %692 = sbr.rel (0) target = $region21
    $region20: #{tpu_custom_call.1} parent=1 // pred_region
      %693 = dma.done [#allocation3], 128
    $region21: #{tpu_custom_call.1} parent=1 // pred_fallthru
      _
    %694 = vsyncpa [#allocation3], 1

</llo_original>
